<compile_context>
chip_gen: v6e
topology: v6e:2x2x1
jax: 0.10.0
libtpu: 0.0.40
codegen_flags: <defaults>
</compile_context>

<pallas_src>
import functools

import jax
import jax.numpy as jnp
from jax.experimental import pallas as pl
from jax.experimental.pallas import tpu as pltpu

# Leading "parallel" grid axis.  2 matches v7x's TC count; on 1-TC chips
# (v5e/v6e) the axis simply iterates sequentially -- correct and ~free.
_NUM_CORE_SLOTS = 2


def _cdiv(a, b):
    return (a + b - 1) // b


def _round_up(x, m):
    return ((x + m - 1) // m) * m


def _pfld_l2_loss_kernel(lm_ref, gt_lm_ref, side_ref, out_ref, acc_ref, *,
                         num_angles, num_attrs, batch, tiles_per_core,
                         needs_mask):
    """One (core_slot, batch_tile) step.

    acc_ref : SMEM (2,) f32, private per core-slot, resident across the inner
              ("arbitrary") tile axis:
                acc[0] = running sum of attr_w * ang_w * lm_loss / B
                acc[1] = running sum of lm_loss / B
    out_ref : (1, 8, 128) f32 VMEM output block owned by this core-slot;
              written once at the last inner step (lane0 = acc[0], lane1.. =
              acc[1]); the wrapper reads [c,0,0] / [c,0,1] and sums over c.
    """
    c = pl.program_id(0)
    t = pl.program_id(1)
    tb = lm_ref.shape[0]

    @pl.when(t == 0)
    def _init():
        acc_ref[0] = 0.0
        acc_ref[1] = 0.0

    # ---- tiny packed side tensor: [angles | gt_angles | attributes] ----
    side = side_ref[...].astype(jnp.float32)                       # (tb, 2A+C)
    angles = side[:, 0:num_angles]
    gt_angles = side[:, num_angles:2 * num_angles]
    attrs = side[:, 2 * num_angles:2 * num_angles + num_attrs]

    # angles weight: sum(1 - cos(angles - gt_angles), axis=1) + 1
    angles_weight = jnp.sum(1.0 - jnp.cos(angles - gt_angles),
                            axis=1, keepdims=True) + 1.0            # (tb, 1)
    # attributes weight: sum(attributes, axis=1) + 1
    attributes_weight = jnp.sum(attrs, axis=1, keepdims=True) + 1.0  # (tb, 1)

    # landmark loss: sum((landmarks - gt_landmarks)^2, axis=1)
    d = lm_ref[...].astype(jnp.float32) - gt_lm_ref[...].astype(jnp.float32)
    landmarks_loss = jnp.sum(d * d, axis=1, keepdims=True)          # (tb, 1)

    weighted = attributes_weight * angles_weight * landmarks_loss    # (tb, 1)

    if needs_mask:
        # Rows past the true batch (partial last tile, or a fully-out-of-range
        # clamped tile on the second core-slot) contribute nothing.  jnp.where
        # selects per element, so NaN/garbage in padded rows cannot propagate.
        row = ((c * tiles_per_core + t) * tb
               + jax.lax.broadcasted_iota(jnp.int32, (tb, 1), 0))
        valid = row < batch
        weighted = jnp.where(valid, weighted, 0.0)
        landmarks_loss = jnp.where(valid, landmarks_loss, 0.0)

    # Fold the mean's 1/B (true batch, not padded count) into each tile.
    inv_b = 1.0 / batch
    acc_ref[0] += inv_b * jnp.sum(weighted)
    acc_ref[1] += inv_b * jnp.sum(landmarks_loss)

    @pl.when(t == pl.num_programs(1) - 1)
    def _emit():
        # Full unmasked (8,128) f32 tile: lane 0 carries acc[0], every other
        # lane carries acc[1]; the wrapper picks [0,0] and [0,1].
        col = jax.lax.broadcasted_iota(jnp.int32, (1, 8, 128), 2)
        out_ref[...] = jnp.where(col == 0, acc_ref[0],
                                 acc_ref[1]).astype(jnp.float32)


def pfld_l2_loss(landmarks, gt_landmarks, angles, gt_angles, attributes, *,
                 block_b=2048):
    """Returns (mean(attr_w * ang_w * lm_loss), mean(lm_loss)) as f32 scalars."""
    B, L = landmarks.shape
    A = angles.shape[1]
    C = attributes.shape[1]
    S = 2 * A + C

    # Pack the three tiny side tensors into one lane-packed array: one DMA
    # instead of three.  The big landmark tensors keep their native dtype and
    # are cast inside the kernel (halves HBM traffic for bf16/f16 inputs).
    side = jnp.concatenate(
        [angles.astype(jnp.float32),
         gt_angles.astype(jnp.float32),
         attributes.astype(jnp.float32)], axis=1)                   # (B, S)

    # --- batch tiling, split across the core-slot axis ---
    per_core_rows = _cdiv(B, _NUM_CORE_SLOTS)
    tb = _round_up(min(block_b, _round_up(per_core_rows, 8)), 8)
    num_data_tiles = _cdiv(B, tb)
    tiles_per_core = _cdiv(num_data_tiles, _NUM_CORE_SLOTS)
    needs_mask = (_NUM_CORE_SLOTS * tiles_per_core * tb != B)
    last_tile = num_data_tiles - 1

    def data_index(c, t):
        # Clamp so fully-out-of-range tiles (possible on the last core-slot)
        # re-read the last valid tile; their rows are masked in the kernel.
        return (jnp.minimum(c * tiles_per_core + t, last_tile), 0)

    # --- lane-padding-aware VMEM budget ---
    #   landmark blocks: tb x round_up(L,128) lanes, 2 inputs x 2 buffers
    #   side block:      tb x round_up(S,128) lanes (f32), 2 buffers
    padded_L = _round_up(L, 128)
    padded_S = _round_up(S, 128)
    lm_itemsize = (jnp.dtype(landmarks.dtype).itemsize
                   + jnp.dtype(gt_landmarks.dtype).itemsize)
    vmem_needed = tb * (2 * padded_L * lm_itemsize + 2 * padded_S * 4)
    # >= 32 MiB so larger block_b still compiles on v5e (16 MiB scoped default);
    # capped well under v7x's 64 MiB physical VMEM.
    vmem_limit = int(min(max(vmem_needed + (8 << 20), 32 << 20), 48 << 20))

    kernel = functools.partial(
        _pfld_l2_loss_kernel,
        num_angles=A, num_attrs=C, batch=B,
        tiles_per_core=tiles_per_core, needs_mask=needs_mask)

    out = pl.pallas_call(
        kernel,
        out_shape=jax.ShapeDtypeStruct((_NUM_CORE_SLOTS, 8, 128), jnp.float32),
        grid=(_NUM_CORE_SLOTS, tiles_per_core),
        in_specs=[
            pl.BlockSpec((tb, L), data_index),
            pl.BlockSpec((tb, L), data_index),
            pl.BlockSpec((tb, S), data_index),
        ],
        # Each core-slot owns its own output block (indexed by the parallel
        # axis only) -> resident across the inner axis, disjoint across cores.
        out_specs=pl.BlockSpec((1, 8, 128), lambda c, t: (c, 0, 0)),
        scratch_shapes=[pltpu.SMEM((2,), jnp.float32)],
        compiler_params=pltpu.CompilerParams(
            dimension_semantics=("parallel", "arbitrary"),
            vmem_limit_bytes=vmem_limit),
    )(landmarks, gt_landmarks, side)

    # Per-core partials already include the 1/B factor; sum them.
    return jnp.sum(out[:, 0, 0]), jnp.sum(out[:, 0, 1])


def _reference(landmarks, gt_landmarks, angles, gt_angles, attributes):
    diff = angles - gt_angles
    angles_weight = jnp.sum(1.0 - jnp.cos(diff), axis=1) + 1.0
    attributes_weight = jnp.sum(attributes.astype(jnp.float32), axis=1) + 1.0
    landmarks_loss = jnp.sum((landmarks - gt_landmarks) ** 2, axis=1)
    return (jnp.mean(attributes_weight * angles_weight * landmarks_loss),
            jnp.mean(landmarks_loss))


if __name__ == "__main__":
    # PFLD shapes: 98 landmarks (x,y) -> 196, 3 euler angles, 6 attributes.
    B, L, A, C = 8, 196, 3, 6
    key = jax.random.PRNGKey(0)
    k1, k2, k3, k4, k5 = jax.random.split(key, 5)

    landmarks = jax.random.normal(k1, (B, L), dtype=jnp.float32)
    gt_landmarks = jax.random.normal(k2, (B, L), dtype=jnp.float32)
    angles = jax.random.normal(k3, (B, A), dtype=jnp.float32) * 0.5
    gt_angles = jax.random.normal(k4, (B, A), dtype=jnp.float32) * 0.5
    attributes = (jax.random.uniform(k5, (B, C)) > 0.5).astype(jnp.float32)

    wloss, lmloss = pfld_l2_loss(landmarks, gt_landmarks, angles, gt_angles,
                                 attributes)
    jax.block_until_ready((wloss, lmloss))

    ref_w, ref_lm = _reference(landmarks, gt_landmarks, angles, gt_angles,
                               attributes)
    assert jnp.allclose(wloss, ref_w, rtol=1e-5, atol=1e-5)
    assert jnp.allclose(lmloss, ref_lm, rtol=1e-5, atol=1e-5)

    # Multi-tile path: B not a multiple of the tile, both core-slots active,
    # clamped out-of-range tile on the second slot, partial-tile masking.
    B2 = 20
    j1, j2, j3, j4, j5 = jax.random.split(jax.random.PRNGKey(1), 5)
    lm2 = jax.random.normal(j1, (B2, L), dtype=jnp.float32)
    gt2 = jax.random.normal(j2, (B2, L), dtype=jnp.float32)
    an2 = jax.random.normal(j3, (B2, A), dtype=jnp.float32) * 0.5
    ga2 = jax.random.normal(j4, (B2, A), dtype=jnp.float32) * 0.5
    at2 = (jax.random.uniform(j5, (B2, C)) > 0.5).astype(jnp.float32)

    w2, l2 = pfld_l2_loss(lm2, gt2, an2, ga2, at2, block_b=8)
    jax.block_until_ready((w2, l2))
    rw2, rl2 = _reference(lm2, gt2, an2, ga2, at2)
    assert jnp.allclose(w2, rw2, rtol=1e-5, atol=1e-5)
    assert jnp.allclose(l2, rl2, rtol=1e-5, atol=1e-5)

    # B < 8 path: block bigger than the array (edge padding + masking).
    B3 = 5
    m1, m2, m3, m4, m5 = jax.random.split(jax.random.PRNGKey(2), 5)
    lm3 = jax.random.normal(m1, (B3, L), dtype=jnp.float32)
    gt3 = jax.random.normal(m2, (B3, L), dtype=jnp.float32)
    an3 = jax.random.normal(m3, (B3, A), dtype=jnp.float32) * 0.5
    ga3 = jax.random.normal(m4, (B3, A), dtype=jnp.float32) * 0.5
    at3 = (jax.random.uniform(m5, (B3, C)) > 0.5).astype(jnp.float32)

    w3, l3 = pfld_l2_loss(lm3, gt3, an3, ga3, at3)
    jax.block_until_ready((w3, l3))
    rw3, rl3 = _reference(lm3, gt3, an3, ga3, at3)
    assert jnp.allclose(w3, rw3, rtol=1e-5, atol=1e-5)
    assert jnp.allclose(l3, rl3, rtol=1e-5, atol=1e-5)

    print("KERNEL_OK")
</pallas_src>

<mosaic_0001>
module attributes {stable_mosaic.version = 11 : i64} {
  func.func @_pfld_l2_loss_kernel(%arg0: i32, %arg1: i32, %arg2: memref<8x196xf32, #tpu.memory_space<vmem>>, %arg3: memref<8x196xf32, #tpu.memory_space<vmem>>, %arg4: memref<8x12xf32, #tpu.memory_space<vmem>>, %arg5: memref<1x8x128xf32, #tpu.memory_space<vmem>>, %arg6: memref<2xf32, #tpu.memory_space<smem>>) attributes {dimension_semantics = [#tpu.dimension_semantics<parallel>, #tpu.dimension_semantics<arbitrary>], iteration_bounds = array<i64: 2, 1>, scalar_prefetch = 0 : i64, scratch_operands = 1 : i64, tpu.core_type = #tpu.core_type<tc>, window_params = [{transform_indices = @transform_0, window_bounds = array<i64: 8, 196>}, {transform_indices = @transform_1, window_bounds = array<i64: 8, 196>}, {transform_indices = @transform_2, window_bounds = array<i64: 8, 12>}, {transform_indices = @transform_3, window_bounds = array<i64: 1, 8, 128>}]} {
    %c0_i32 = arith.constant 0 : i32
    %0 = arith.cmpi eq, %arg1, %c0_i32 : i32
    %1 = arith.extui %0 : i1 to i32
    %c0_i32_0 = arith.constant 0 : i32
    %2 = arith.cmpi ne, %1, %c0_i32_0 : i32
    scf.if %2 {
      %cst_23 = arith.constant 0.000000e+00 : f32
      %c0_24 = arith.constant 0 : index
      %58 = memref.load %arg6[%c0_24] : memref<2xf32, #tpu.memory_space<smem>>
      memref.store %cst_23, %arg6[%c0_24] : memref<2xf32, #tpu.memory_space<smem>>
      %cst_25 = arith.constant 0.000000e+00 : f32
      %c1_26 = arith.constant 1 : index
      %59 = memref.load %arg6[%c1_26] : memref<2xf32, #tpu.memory_space<smem>>
      memref.store %cst_25, %arg6[%c1_26] : memref<2xf32, #tpu.memory_space<smem>>
    } else {
    }
    %c0 = arith.constant 0 : index
    %c0_1 = arith.constant 0 : index
    %3 = vector.load %arg4[%c0, %c0_1] : memref<8x12xf32, #tpu.memory_space<vmem>>, vector<8x12xf32>
    %4 = vector.extract_strided_slice %3 {offsets = [0, 0], sizes = [8, 3], strides = [1, 1]} : vector<8x12xf32> to vector<8x3xf32>
    %5 = vector.extract_strided_slice %3 {offsets = [0, 3], sizes = [8, 3], strides = [1, 1]} : vector<8x12xf32> to vector<8x3xf32>
    %6 = vector.extract_strided_slice %3 {offsets = [0, 6], sizes = [8, 6], strides = [1, 1]} : vector<8x12xf32> to vector<8x6xf32>
    %7 = arith.subf %4, %5 : vector<8x3xf32>
    %8 = math.cos %7 : vector<8x3xf32>
    %cst = arith.constant 1.000000e+00 : f32
    %9 = vector.broadcast %cst : f32 to vector<8x3xf32>
    %10 = arith.subf %9, %8 : vector<8x3xf32>
    %cst_2 = arith.constant dense<0.000000e+00> : vector<8xf32>
    %11 = vector.multi_reduction <add>, %10, %cst_2 [1] : vector<8x3xf32> to vector<8xf32>
    %12 = vector.shape_cast %11 : vector<8xf32> to vector<8x1xf32>
    %cst_3 = arith.constant 1.000000e+00 : f32
    %13 = vector.broadcast %cst_3 : f32 to vector<8x1xf32>
    %14 = arith.addf %12, %13 : vector<8x1xf32>
    %cst_4 = arith.constant dense<0.000000e+00> : vector<8xf32>
    %15 = vector.multi_reduction <add>, %6, %cst_4 [1] : vector<8x6xf32> to vector<8xf32>
    %16 = vector.shape_cast %15 : vector<8xf32> to vector<8x1xf32>
    %cst_5 = arith.constant 1.000000e+00 : f32
    %17 = vector.broadcast %cst_5 : f32 to vector<8x1xf32>
    %18 = arith.addf %16, %17 : vector<8x1xf32>
    %c0_6 = arith.constant 0 : index
    %c0_7 = arith.constant 0 : index
    %19 = vector.load %arg2[%c0_6, %c0_7] : memref<8x196xf32, #tpu.memory_space<vmem>>, vector<8x196xf32>
    %c0_8 = arith.constant 0 : index
    %c0_9 = arith.constant 0 : index
    %20 = vector.load %arg3[%c0_8, %c0_9] : memref<8x196xf32, #tpu.memory_space<vmem>>, vector<8x196xf32>
    %21 = arith.subf %19, %20 : vector<8x196xf32>
    %22 = arith.mulf %21, %21 : vector<8x196xf32>
    %cst_10 = arith.constant dense<0.000000e+00> : vector<8xf32>
    %23 = vector.multi_reduction <add>, %22, %cst_10 [1] : vector<8x196xf32> to vector<8xf32>
    %24 = vector.shape_cast %23 : vector<8xf32> to vector<8x1xf32>
    %25 = arith.mulf %18, %14 : vector<8x1xf32>
    %26 = arith.mulf %25, %24 : vector<8x1xf32>
    %c1_i32 = arith.constant 1 : i32
    %27 = arith.muli %arg0, %c1_i32 : i32
    %28 = arith.addi %27, %arg1 : i32
    %c8_i32 = arith.constant 8 : i32
    %29 = arith.muli %28, %c8_i32 : i32
    %30 = tpu.iota {dimensions = array<i32: 0>} : vector<8x1xi32>
    %31 = vector.broadcast %29 : i32 to vector<8x1xi32>
    %32 = arith.addi %31, %30 : vector<8x1xi32>
    %c8_i32_11 = arith.constant 8 : i32
    %33 = vector.broadcast %c8_i32_11 : i32 to vector<8x1xi32>
    %34 = arith.cmpi slt, %32, %33 : vector<8x1xi32>
    %cst_12 = arith.constant 0.000000e+00 : f32
    %35 = vector.broadcast %cst_12 : f32 to vector<8x1xf32>
    %36 = arith.select %34, %26, %35 : vector<8x1xi1>, vector<8x1xf32>
    %cst_13 = arith.constant 0.000000e+00 : f32
    %37 = vector.broadcast %cst_13 : f32 to vector<8x1xf32>
    %38 = arith.select %34, %24, %37 : vector<8x1xi1>, vector<8x1xf32>
    %c0_14 = arith.constant 0 : index
    %39 = memref.load %arg6[%c0_14] : memref<2xf32, #tpu.memory_space<smem>>
    %40 = vector.shape_cast %36 : vector<8x1xf32> to vector<1x8x1xf32>
    %cst_15 = arith.constant dense<0.000000e+00> : vector<1xf32>
    %41 = vector.multi_reduction <add>, %40, %cst_15 [1, 2] : vector<1x8x1xf32> to vector<1xf32>
    %42 = vector.shape_cast %41 : vector<1xf32> to vector<1x1x1xf32>
    %43 = vector.extract %42[0, 0, 0] : f32 from vector<1x1x1xf32>
    %cst_16 = arith.constant 1.250000e-01 : f32
    %44 = arith.mulf %cst_16, %43 : f32
    %45 = arith.addf %39, %44 : f32
    %c0_17 = arith.constant 0 : index
    %46 = memref.load %arg6[%c0_17] : memref<2xf32, #tpu.memory_space<smem>>
    memref.store %45, %arg6[%c0_17] : memref<2xf32, #tpu.memory_space<smem>>
    %c1 = arith.constant 1 : index
    %47 = memref.load %arg6[%c1] : memref<2xf32, #tpu.memory_space<smem>>
    %48 = vector.shape_cast %38 : vector<8x1xf32> to vector<1x8x1xf32>
    %cst_18 = arith.constant dense<0.000000e+00> : vector<1xf32>
    %49 = vector.multi_reduction <add>, %48, %cst_18 [1, 2] : vector<1x8x1xf32> to vector<1xf32>
    %50 = vector.shape_cast %49 : vector<1xf32> to vector<1x1x1xf32>
    %51 = vector.extract %50[0, 0, 0] : f32 from vector<1x1x1xf32>
    %cst_19 = arith.constant 1.250000e-01 : f32
    %52 = arith.mulf %cst_19, %51 : f32
    %53 = arith.addf %47, %52 : f32
    %c1_20 = arith.constant 1 : index
    %54 = memref.load %arg6[%c1_20] : memref<2xf32, #tpu.memory_space<smem>>
    memref.store %53, %arg6[%c1_20] : memref<2xf32, #tpu.memory_space<smem>>
    %c0_i32_21 = arith.constant 0 : i32
    %55 = arith.cmpi eq, %arg1, %c0_i32_21 : i32
    %56 = arith.extui %55 : i1 to i32
    %c0_i32_22 = arith.constant 0 : i32
    %57 = arith.cmpi ne, %56, %c0_i32_22 : i32
    scf.if %57 {
      %58 = tpu.iota {dimensions = array<i32: 2>} : vector<1x8x128xi32>
      %c0_i32_23 = arith.constant 0 : i32
      %59 = vector.broadcast %c0_i32_23 : i32 to vector<1x8x128xi32>
      %60 = arith.cmpi eq, %58, %59 : vector<1x8x128xi32>
      %c0_24 = arith.constant 0 : index
      %61 = memref.load %arg6[%c0_24] : memref<2xf32, #tpu.memory_space<smem>>
      %c1_25 = arith.constant 1 : index
      %62 = memref.load %arg6[%c1_25] : memref<2xf32, #tpu.memory_space<smem>>
      %63 = vector.broadcast %61 : f32 to vector<1x8x128xf32>
      %64 = vector.broadcast %62 : f32 to vector<1x8x128xf32>
      %65 = arith.select %60, %63, %64 : vector<1x8x128xi1>, vector<1x8x128xf32>
      %c0_26 = arith.constant 0 : index
      %c0_27 = arith.constant 0 : index
      %c0_28 = arith.constant 0 : index
      %66 = vector.load %arg5[%c0_26, %c0_27, %c0_28] : memref<1x8x128xf32, #tpu.memory_space<vmem>>, vector<1x8x128xf32>
      tpu.vector_store %arg5[%c0_26, %c0_27, %c0_28], %65 {strides = array<i32>} : memref<1x8x128xf32, #tpu.memory_space<vmem>>, vector<1x8x128xf32>,
    } else {
    }
    return
  }
  func.func @transform_0(%arg0: i32, %arg1: i32) -> (i32, i32) {
    %c1_i32 = arith.constant 1 : i32
    %0 = arith.muli %arg0, %c1_i32 : i32
    %1 = arith.addi %0, %arg1 : i32
    %c0_i32 = arith.constant 0 : i32
    %2 = arith.minsi %1, %c0_i32 : i32
    %c0_i32_0 = arith.constant 0 : i32
    %c0_i32_1 = arith.constant 0 : i32
    return %2, %c0_i32_0 : i32, i32
  }
  func.func @transform_1(%arg0: i32, %arg1: i32) -> (i32, i32) {
    %c1_i32 = arith.constant 1 : i32
    %0 = arith.muli %arg0, %c1_i32 : i32
    %1 = arith.addi %0, %arg1 : i32
    %c0_i32 = arith.constant 0 : i32
    %2 = arith.minsi %1, %c0_i32 : i32
    %c0_i32_0 = arith.constant 0 : i32
    %c0_i32_1 = arith.constant 0 : i32
    return %2, %c0_i32_0 : i32, i32
  }
  func.func @transform_2(%arg0: i32, %arg1: i32) -> (i32, i32) {
    %c1_i32 = arith.constant 1 : i32
    %0 = arith.muli %arg0, %c1_i32 : i32
    %1 = arith.addi %0, %arg1 : i32
    %c0_i32 = arith.constant 0 : i32
    %2 = arith.minsi %1, %c0_i32 : i32
    %c0_i32_0 = arith.constant 0 : i32
    %c0_i32_1 = arith.constant 0 : i32
    return %2, %c0_i32_0 : i32, i32
  }
  func.func @transform_3(%arg0: i32, %arg1: i32) -> (i32, i32, i32) {
    %c0_i32 = arith.constant 0 : i32
    %c0_i32_0 = arith.constant 0 : i32
    %c0_i32_1 = arith.constant 0 : i32
    return %arg0, %c0_i32, %c0_i32_0 : i32, i32, i32
  }
}

</mosaic_0001>

<llo_original>
// kernel: tpu_custom_call.1
$region0: #{tpu_custom_call.1}
  #allocation0 [shape = 'u32[]', space=smem, size = 0x4, offset = 0x4, fixed_abs, tag = 'smem constant byte address 0x4 - core index']
  #allocation1 [shape = 'u32[144,128]{1,0:T(1,128)}', space=vmem, size = 0x12000, scoped, tag = 'internal scratch']
  #allocation2 [shape = 'f32[2]{0:T(128)}', space=smem, size = 0x200, scoped, tag = 'scratch operand']
  %s0 = inlined_call_operand.hbm [shape: f32[8,196], index: 0, kind: input, shape index: {}]
  %s1 = inlined_call_operand.hbm [shape: f32[8,196], index: 1, kind: input, shape index: {}]
  %s2 = inlined_call_operand.hbm [shape: f32[8,12], index: 2, kind: input, shape index: {}]
  %s3 = inlined_call_operand.hbm [shape: f32[2,8,128], index: 3, kind: output, shape index: {}]
  %s4 = sld [smem:[#allocation0]]
  $region65: #{tpu_custom_call.1} parent=0
    _
  %s6 = ssub.s32 1, %s4
  %s7 = scalar_select 0, %s6, %s4
  $region1: #{tpu_custom_call.1} parent=0
    #allocation3 [shape = 'u8[16384]{0}', space=vmem, size = 0x4000, scoped, tag = 'input window, operand 0']
    #allocation4 [shape = 's32[2]{0}', space=sflag, size = 0x8, scoped, tag = 'scoped memory for tpu_custom_call.1']
    #allocation5 [shape = 's32[2]{0}', space=sflag, size = 0x8, scoped, tag = 'scoped memory for tpu_custom_call.1']
    #allocation6 [shape = 'u8[16384]{0}', space=vmem, size = 0x4000, scoped, tag = 'input window, operand 1']
    #allocation7 [shape = 's32[2]{0}', space=sflag, size = 0x8, scoped, tag = 'scoped memory for tpu_custom_call.1']
    #allocation8 [shape = 'u8[8192]{0}', space=vmem, size = 0x2000, scoped, tag = 'input window, operand 2']
    #allocation9 [shape = 'u8[8192]{0}', space=vmem, size = 0x2000, scoped, tag = 'output window, operand 0']
    %8 = vsyncpa [#allocation4], 0
    %s9 = scalar_lea.sflag [#allocation4], 1
    %10 = vsyncpa %s9, 0
    %11 = vsyncpa [#allocation7], 0
    %s12 = scalar_lea.sflag [#allocation7], 1
    %13 = vsyncpa %s12, 0
    %14 = vsyncpa [#allocation5], 0
    %s15 = scalar_lea.sflag [#allocation5], 1
    %16 = vsyncpa %s15, 0
    loop: start=0, step=1, limit=4
    $region2: #{tpu_custom_call.1} parent=1 // loop_pre_header
      _
    $region3: #{tpu_custom_call.1} parent=1 // loop_header
      %s18 = sphi 0, %s22
      %p19 = scmp.ge.s32.totalorder %s18, 4
      %s25 = sphi 0, %s37
      %s26 = sphi 0, %s33
      %s27 = sphi 0, %s25
      %s28 = sphi 0, %s26
      %s29 = sphi 0, %s27
      %s30 = sphi 0, %s28
      %s46 = sphi 0, %s48
      %s49 = sphi 0, %s46
      %s50 = sphi 0, %s49
      %s66 = sphi 0, %s50
      %s78 = sphi 0, %s80
      %s81 = sphi 0, %s78
      %s82 = sphi 0, %s81
      %s98 = sphi 0, %s82
      %s110 = sphi 0, %s112
      %s113 = sphi 0, %s110
      %s114 = sphi 0, %s113
      %s130 = sphi 0, %s114
      %s136 = sphi 0, %s138
      %s139 = sphi 0, %s136
      %s140 = sphi 0, %s139
      %s156 = sphi 0, %s140
    $region4: #{tpu_custom_call.1} parent=1 // loop_header_branch
      %21 = sbr.rel (%p19) target = $region8
    $region5: #{tpu_custom_call.1} parent=1 // loop_body
      %s23 = ssub.s32 %s18, 1
      %s24 = ssub.s32 %s18, 2
      %s31 = sadd.s32 1, %s26
      %p32 = scmp.ge.s32.totalorder %s31, 1
      %s33 = scalar_select %p32, 0, %s31
      %s34 = sadd.s32 1, %s25
      %s35 = scalar_select %p32, %s34, %s25
      %p36 = scmp.ge.s32.totalorder %s35, 2
      %s37 = scalar_select %p36, 0, %s35
      %s38 = sadd.s32 %s25, %s26
      %p39 = scmp.lt.s32.totalorder %s38, 0
      %s40 = scalar_select %p39, %s38, 0
      %s41 = sadd.s32 %s37, %s33
      %p42 = scmp.lt.s32.totalorder %s41, 0
      %s43 = scalar_select %p42, %s41, 0
      %s44 = ssub.s32 %s40, %s43
      %p45 = scmp.eq.s32.totalorder %s44, 0
      %s47 = sadd.s32 %s46, 1
      %s48 = scalar_select %p45, %s46, %s47
      %p51 = pneg %p45
      %p52 = scmp.eq.s32.totalorder %s18, 1
      %p53 = por %p51, %p52
      %p54 = scmp.ne.s32.totalorder %s46, %s49
      %p55 = scmp.eq.s32.totalorder %s18, 0
      %p56 = por %p54, %p55
      %p57 = scmp.ne.s32.totalorder %s46, %s49
      %p58 = scmp.eq.s32.totalorder %s23, 1
      %p59 = por %p57, %p58
      %p60 = scmp.ne.s32.totalorder %s49, %s50
      %p61 = scmp.eq.s32.totalorder %s23, 0
      %p62 = por %p60, %p61
      %p63 = scmp.ne.s32.totalorder %s49, %s50
      %p64 = scmp.eq.s32.totalorder %s24, 1
      %p65 = por %p63, %p64
      %p67 = scmp.ne.s32.totalorder %s50, %s66
      %p68 = scmp.eq.s32.totalorder %s24, 0
      %p69 = por %p67, %p68
      %s70 = sadd.s32 %s25, %s26
      %p71 = scmp.lt.s32.totalorder %s70, 0
      %s72 = scalar_select %p71, %s70, 0
      %s73 = sadd.s32 %s37, %s33
      %p74 = scmp.lt.s32.totalorder %s73, 0
      %s75 = scalar_select %p74, %s73, 0
      %s76 = ssub.s32 %s72, %s75
      %p77 = scmp.eq.s32.totalorder %s76, 0
      %s79 = sadd.s32 %s78, 1
      %s80 = scalar_select %p77, %s78, %s79
      %p83 = pneg %p77
      %p84 = scmp.eq.s32.totalorder %s18, 1
      %p85 = por %p83, %p84
      %p86 = scmp.ne.s32.totalorder %s78, %s81
      %p87 = scmp.eq.s32.totalorder %s18, 0
      %p88 = por %p86, %p87
      %p89 = scmp.ne.s32.totalorder %s78, %s81
      %p90 = scmp.eq.s32.totalorder %s23, 1
      %p91 = por %p89, %p90
      %p92 = scmp.ne.s32.totalorder %s81, %s82
      %p93 = scmp.eq.s32.totalorder %s23, 0
      %p94 = por %p92, %p93
      %p95 = scmp.ne.s32.totalorder %s81, %s82
      %p96 = scmp.eq.s32.totalorder %s24, 1
      %p97 = por %p95, %p96
      %p99 = scmp.ne.s32.totalorder %s82, %s98
      %p100 = scmp.eq.s32.totalorder %s24, 0
      %p101 = por %p99, %p100
      %s102 = sadd.s32 %s25, %s26
      %p103 = scmp.lt.s32.totalorder %s102, 0
      %s104 = scalar_select %p103, %s102, 0
      %s105 = sadd.s32 %s37, %s33
      %p106 = scmp.lt.s32.totalorder %s105, 0
      %s107 = scalar_select %p106, %s105, 0
      %s108 = ssub.s32 %s104, %s107
      %p109 = scmp.eq.s32.totalorder %s108, 0
      %s111 = sadd.s32 %s110, 1
      %s112 = scalar_select %p109, %s110, %s111
      %p115 = pneg %p109
      %p116 = scmp.eq.s32.totalorder %s18, 1
      %p117 = por %p115, %p116
      %p118 = scmp.ne.s32.totalorder %s110, %s113
      %p119 = scmp.eq.s32.totalorder %s18, 0
      %p120 = por %p118, %p119
      %p121 = scmp.ne.s32.totalorder %s110, %s113
      %p122 = scmp.eq.s32.totalorder %s23, 1
      %p123 = por %p121, %p122
      %p124 = scmp.ne.s32.totalorder %s113, %s114
      %p125 = scmp.eq.s32.totalorder %s23, 0
      %p126 = por %p124, %p125
      %p127 = scmp.ne.s32.totalorder %s113, %s114
      %p128 = scmp.eq.s32.totalorder %s24, 1
      %p129 = por %p127, %p128
      %p131 = scmp.ne.s32.totalorder %s114, %s130
      %p132 = scmp.eq.s32.totalorder %s24, 0
      %p133 = por %p131, %p132
      %s134 = ssub.s32 %s25, %s37
      %p135 = scmp.eq.s32.totalorder %s134, 0
      %s137 = sadd.s32 %s136, 1
      %s138 = scalar_select %p135, %s136, %s137
      %p141 = pneg %p135
      %p142 = scmp.eq.s32.totalorder %s18, 1
      %p143 = por %p141, %p142
      %p144 = scmp.ne.s32.totalorder %s136, %s139
      %p145 = scmp.eq.s32.totalorder %s18, 0
      %p146 = por %p144, %p145
      %p147 = scmp.ne.s32.totalorder %s136, %s139
      %p148 = scmp.eq.s32.totalorder %s23, 1
      %p149 = por %p147, %p148
      %p150 = scmp.ne.s32.totalorder %s139, %s140
      %p151 = scmp.eq.s32.totalorder %s23, 0
      %p152 = por %p150, %p151
      %p153 = scmp.ne.s32.totalorder %s139, %s140
      %p154 = scmp.eq.s32.totalorder %s24, 1
      %p155 = por %p153, %p154
      %p157 = scmp.ne.s32.totalorder %s140, %s156
      %p158 = scmp.eq.s32.totalorder %s24, 0
      %p159 = por %p157, %p158
      %p160 = scmp.le.s32.totalorder 1, %s18
      %p161 = scmp.lt.s32.totalorder %s18, 3
      %p162 = pnand %p160, %p161
      %p163 = pneg %p162
      // Predicated region
      $region9: #{tpu_custom_call.1} parent=5 // pred_check
        _
      $region10: #{tpu_custom_call.1} parent=5 // pred_check_branch
        %165 = sbr.rel (%p162) target = $region12
      $region11: #{tpu_custom_call.1} parent=5 // pred_region
        %s166 = ssub.s32 %s18, 1
      $region12: #{tpu_custom_call.1} parent=5 // pred_fallthru
        _
      %p167 = scmp.lt.s32.totalorder %s18, 2
      // Predicated region
      $region13: #{tpu_custom_call.1} parent=5 // pred_check
        %p168 = pneg %p167
      $region14: #{tpu_custom_call.1} parent=5 // pred_check_branch
        %170 = sbr.rel (%p168) target = $region16
      $region15: #{tpu_custom_call.1} parent=5 // pred_region
        // Predicated region
        $region17: #{tpu_custom_call.1} parent=15 // pred_check
          %p171 = pneg %p56
        $region18: #{tpu_custom_call.1} parent=15 // pred_check_branch
          %173 = sbr.rel (%p171) target = $region20
        $region19: #{tpu_custom_call.1} parent=15 // pred_region
          %s174 = sand.u32 %s46, 1
          %s175 = scalar_lea.sflag [#allocation4], %s174
          %s176 = sand.u32 %s46, 1
          %s177 = smul.addr %s176, 16
          %s178 = scalar_lea.vmem [#allocation3], %s177
          %s179 = sadd.s32 %s25, %s26
          %p180 = scmp.lt.s32.totalorder %s179, 0
          %s181 = scalar_select %p180, %s179, 0
          %s183 = ssub.s32 256, 256
          %184 = vsyncadd %s175, %s183
          %s185 = smul.addr %s181, 2
          %s186 = smul.addr %s185, 128
          %s187 = scalar_lea.hbm %s0, %s186
          %s189 = sshll.u32 %s178, 4
          %s190 = int_to_ptr.vmem [resolvable:$true] %s189
          %192 = dma.hbm_to_vmem [thread:$0]  %s187, 256, %s190, %s175
        $region20: #{tpu_custom_call.1} parent=15 // pred_fallthru
          _
        // Predicated region
        $region21: #{tpu_custom_call.1} parent=15 // pred_check
          %p193 = pneg %p88
        $region22: #{tpu_custom_call.1} parent=15 // pred_check_branch
          %195 = sbr.rel (%p193) target = $region24
        $region23: #{tpu_custom_call.1} parent=15 // pred_region
          %s196 = sand.u32 %s18, 1
          %s197 = scalar_lea.sflag [#allocation7], %s196
          %s198 = sand.u32 %s78, 1
          %s199 = smul.addr %s198, 16
          %s200 = scalar_lea.vmem [#allocation6], %s199
          %s201 = sadd.s32 %s25, %s26
          %p202 = scmp.lt.s32.totalorder %s201, 0
          %s203 = scalar_select %p202, %s201, 0
          %s205 = ssub.s32 256, 256
          %206 = vsyncadd %s197, %s205
          %s207 = smul.addr %s203, 2
          %s208 = smul.addr %s207, 128
          %s209 = scalar_lea.hbm %s1, %s208
          %s211 = sshll.u32 %s200, 4
          %s212 = int_to_ptr.vmem [resolvable:$true] %s211
          %214 = dma.hbm_to_vmem [thread:$0]  %s209, 256, %s212, %s197
        $region24: #{tpu_custom_call.1} parent=15 // pred_fallthru
          _
        // Predicated region
        $region25: #{tpu_custom_call.1} parent=15 // pred_check
          %p215 = pneg %p120
        $region26: #{tpu_custom_call.1} parent=15 // pred_check_branch
          %217 = sbr.rel (%p215) target = $region28
        $region27: #{tpu_custom_call.1} parent=15 // pred_region
          %s218 = sand.u32 %s18, 1
          %s219 = scalar_lea.sflag [#allocation7], %s218
          %s220 = sand.u32 %s110, 1
          %s221 = smul.addr %s220, 8
          %s222 = scalar_lea.vmem [#allocation8], %s221
          %s223 = sadd.s32 %s25, %s26
          %p224 = scmp.lt.s32.totalorder %s223, 0
          %s225 = scalar_select %p224, %s223, 0
          %s227 = ssub.s32 128, 128
          %228 = vsyncadd %s219, %s227
          %s229 = smul.addr %s225, 128
          %s230 = scalar_lea.hbm %s2, %s229
          %s232 = sshll.u32 %s222, 4
          %s233 = int_to_ptr.vmem [resolvable:$true] %s232
          %235 = dma.hbm_to_vmem [thread:$0]  %s230, 128, %s233, %s219
        $region28: #{tpu_custom_call.1} parent=15 // pred_fallthru
          _
      $region16: #{tpu_custom_call.1} parent=5 // pred_fallthru
        _
      %p236 = scmp.le.s32.totalorder 1, %s18
      %p237 = scmp.lt.s32.totalorder %s18, 3
      %p238 = pnand %p236, %p237
      %p239 = pneg %p238
      // Predicated region
      $region29: #{tpu_custom_call.1} parent=5 // pred_check
        _
      $region30: #{tpu_custom_call.1} parent=5 // pred_check_branch
        %241 = sbr.rel (%p238) target = $region32
      $region31: #{tpu_custom_call.1} parent=5 // pred_region
        %s242 = ssub.s32 %s18, 1
        %s243 = sand.u32 %s49, 1
        %s244 = scalar_lea.sflag [#allocation4], %s243
        %s245 = sand.u32 %s49, 1
        %s246 = smul.addr %s245, 16
        %s247 = scalar_lea.vmem [#allocation3], %s246
        // Predicated region
        $region33: #{tpu_custom_call.1} parent=31 // pred_check
          %p248 = pneg %p62
        $region34: #{tpu_custom_call.1} parent=31 // pred_check_branch
          %250 = sbr.rel (%p248) target = $region36
        $region35: #{tpu_custom_call.1} parent=31 // pred_region
          %251 = dma.done %s244, 256
        $region36: #{tpu_custom_call.1} parent=31 // pred_fallthru
          _
        %s252 = sand.u32 %s23, 1
        %s253 = scalar_lea.sflag [#allocation7], %s252
        %s254 = sand.u32 %s81, 1
        %s255 = smul.addr %s254, 16
        %s256 = scalar_lea.vmem [#allocation6], %s255
        // Predicated region
        $region37: #{tpu_custom_call.1} parent=31 // pred_check
          %p257 = pneg %p94
        $region38: #{tpu_custom_call.1} parent=31 // pred_check_branch
          %259 = sbr.rel (%p257) target = $region40
        $region39: #{tpu_custom_call.1} parent=31 // pred_region
          %260 = dma.done %s253, 256
        $region40: #{tpu_custom_call.1} parent=31 // pred_fallthru
          _
        %s261 = sand.u32 %s23, 1
        %s262 = scalar_lea.sflag [#allocation7], %s261
        %s263 = sand.u32 %s113, 1
        %s264 = smul.addr %s263, 8
        %s265 = scalar_lea.vmem [#allocation8], %s264
        // Predicated region
        $region41: #{tpu_custom_call.1} parent=31 // pred_check
          %p266 = pneg %p126
        $region42: #{tpu_custom_call.1} parent=31 // pred_check_branch
          %268 = sbr.rel (%p266) target = $region44
        $region43: #{tpu_custom_call.1} parent=31 // pred_region
          %269 = dma.done %s262, 128
        $region44: #{tpu_custom_call.1} parent=31 // pred_fallthru
          _
        %s270 = sand.u32 %s49, 1
        %s271 = scalar_lea.sflag [#allocation4], %s270
        %s272 = sand.u32 %s49, 1
        %s273 = smul.addr %s272, 16
        %s274 = scalar_lea.vmem [#allocation3], %s273
        %p275 = pneg %p62
        %p276 = pneg %p59
        %s277 = sand.u32 %s23, 1
        %s278 = scalar_lea.sflag [#allocation7], %s277
        %s279 = sand.u32 %s81, 1
        %s280 = smul.addr %s279, 16
        %s281 = scalar_lea.vmem [#allocation6], %s280
        %p282 = pneg %p94
        %p283 = pneg %p91
        %s284 = sand.u32 %s23, 1
        %s285 = scalar_lea.sflag [#allocation7], %s284
        %s286 = sand.u32 %s113, 1
        %s287 = smul.addr %s286, 8
        %s288 = scalar_lea.vmem [#allocation8], %s287
        %p289 = pneg %p126
        %p290 = pneg %p123
        %p291 = pneg %p152
        %p292 = pneg %p149
        %s293 = sand.u32 %s139, 1
        %s294 = scalar_lea.sflag [#allocation5], %s293
        %s295 = sand.u32 %s139, 1
        %s296 = smul.addr %s295, 8
        %s297 = scalar_lea.vmem [#allocation9], %s296
        %s298 = sadd.s32 %s27, %s28
        %p299 = scmp.lt.s32.totalorder %s298, 0
        %s300 = scalar_select %p299, %s298, 0
        %s301 = sadd.s32 %s27, %s28
        %p302 = scmp.lt.s32.totalorder %s301, 0
        %s303 = scalar_select %p302, %s301, 0
        %s304 = sadd.s32 %s27, %s28
        %p305 = scmp.lt.s32.totalorder %s304, 0
        %s306 = scalar_select %p305, %s304, 0
        %p307 = scmp.eq.s32.totalorder %s28, 0
        // Predicated region
        $region45: #{tpu_custom_call.1} parent=31 // pred_check
          %p308 = pneg %p307
        $region46: #{tpu_custom_call.1} parent=31 // pred_check_branch
          %310 = sbr.rel (%p308) target = $region48
        $region47: #{tpu_custom_call.1} parent=31 // pred_region
          %s311 = scalar_lea.smem [#allocation2], 0
          %312 = sst [smem:[%s311]] 0.0
          %s313 = scalar_lea.smem [#allocation2], 1
          %314 = sst [smem:[%s313]] 0.0
        $region48: #{tpu_custom_call.1} parent=31 // pred_fallthru
          _
        %v315 = vld [vmem:[%s265] sm:$0xff]
        %317 = vrot.lane.b32.xlu0 %v315, 125
        %v318 = vpop.permute.xlu0 %317
        %v320 = vsub.f32 %v315, %v318
        %v321 = vand.u32 2147483647, %v320
        %vm322 = vcmp.le.f32.partialorder %v321, 0.7853982
        %vm323 = vcmp.lt.s32.totalorder %v320, 0
        %v324 = vand.u32 %v320, 2139095040
        %v325 = vshrl.u32 %v324, 23
        %v326 = vsub.s32 %v325, 127
        %v327 = vand.u32 2147483647, %v320
        %v328 = vand.u32 %v327, 8388607
        %v329 = vor.u32 %v328, 8388608
        %v330 = vsub.s32 0, %v329
        %v331 = vadd.s32 %v326, 1
        %vm332 = vcmp.gt.s32.totalorder %v331, 0
        %v333 = vsel %vm332, %v331, 0
        %v334 = vshrl.u32 %v333, 5
        %v335 = vand.u32 %v333, 31
        %v336 = vsub.s32 32, %v335
        %v337 = vshrl.u32 683565275, %v336
        %v338 = vshll.u32 683565275, %v335
        %v339 = vshrl.u32 2475754826, %v336
        %v340 = vor.u32 %v338, %v339
        %v341 = vshll.u32 2475754826, %v335
        %v342 = vshrl.u32 2131351028, %v336
        %v343 = vor.u32 %v341, %v342
        %v344 = vshll.u32 2131351028, %v335
        %v345 = vshrl.u32 2102212464, %v336
        %v346 = vor.u32 %v344, %v345
        %v347 = vshll.u32 2102212464, %v335
        %v348 = vshrl.u32 920167782, %v336
        %v349 = vor.u32 %v347, %v348
        %v350 = vshll.u32 920167782, %v335
        %v351 = vshrl.u32 1326507024, %v336
        %v352 = vor.u32 %v350, %v351
        %vm353 = vcmp.lt.s32.totalorder %v334, 1
        %vm354 = vcmp.lt.s32.totalorder %v334, 2
        %vm355 = vcmp.lt.s32.totalorder %v334, 3
        %vm356 = vcmp.lt.s32.totalorder %v334, 4
        %v357 = vsel %vm353, %v337, %v340
        %v358 = vsel %vm356, %v346, 2102212464
        %v359 = vsel %vm355, %v343, %v358
        %v360 = vsel %vm354, %v357, %v359
        %v361 = vsel %vm353, %v340, %v343
        %v362 = vsel %vm356, %v349, 920167782
        %v363 = vsel %vm355, %v346, %v362
        %v364 = vsel %vm354, %v361, %v363
        %v365 = vsel %vm353, %v343, %v346
        %v366 = vsel %vm356, %v352, 1326507024
        %v367 = vsel %vm355, %v349, %v366
        %v368 = vsel %vm354, %v365, %v367
        %v369 = vshll.u32 %v329, 8
        %v370 = vmul.u32.u64.compose %v369, %v368
        %v371 = vextract.low.u32 %v370
        %v372 = vextract.high.u32 %v370
        %v373 = vmul.u32.u64.compose %v369, %v364
        %v374 = vextract.low.u32 %v373
        %v375 = vextract.high.u32 %v373
        %v376 = vmul.u32 %v369, %v360
        %v377 = vadd.s32 %v372, %v374
        %vm378 = vc.u32 %v372, %v374
        %v379 = vadd.s32 %v375, 1
        %v380 = vsel %vm378, %v379, %v375
        %v381 = vadd.s32 %v376, %v380
        %v382 = vadd.s32 %v381, 536870912
        %v383 = vshrl.u32 %v382, 30
        %v384 = vshll.u32 %v383, 30
        %v385 = vsub.s32 %v381, %v384
        %vm386 = vcmp.lt.s32.totalorder %v385, 0
        %v387 = vsub.s32 0, %v385
        %v388 = vsel %vm386, %v387, %v385
        %v389 = vclz %v388
        %v390 = vsub.s32 %v389, 2
        %vm391 = vcmp.gt.s32.totalorder 0, %v390
        %v392 = vsel %vm391, 0, %v390
        %v393 = vsub.s32 32, %v392
        %v394 = vshll.u32 %v385, %v392
        %v395 = vshrl.u32 %v377, %v393
        %v396 = vor.u32 %v394, %v395
        %v397 = vsub.s32 4294967266, %v392
        %v398 = vadd.s32 %v397, 127
        %v399 = vshll.u32 %v398, 23
        %v400 = vor.u32 4788187, %v399
        %v401 = vand.u32 2147483647, %v400
        %v403 = vcvt.s32.f32 %v396
        %v404 = vmul.f32 %v403, %v401
        %v405 = vxor.u32 %v404, 2147483648
        %v406 = vsel %vm323, %v405, %v404
        %v407 = vsub.s32 4, %v383
        %v408 = vsel %vm323, %v407, %v383
        %v409 = vsel %vm322, %v320, %v406
        %v410 = vsel %vm322, 0, %v408
        %v411 = vcosq.f32.pop %v409
        %v412 = vsinq.f32.pop %v409
        %vm413 = vweird.f32 %v320
        %v414 = vand.u32 %v410, 3
        %vm415 = vcmp.lt.s32.totalorder %v414, 2
        %vm416 = vcmp.eq.s32.totalorder %v414, 0
        %v417 = vxor.u32 %v412, 2147483648
        %v418 = vsel %vm416, %v411, %v417
        %vm419 = vcmp.eq.s32.totalorder %v414, 2
        %v420 = vxor.u32 %v411, 2147483648
        %v421 = vsel %vm419, %v420, %v412
        %v422 = vsel %vm415, %v418, %v421
        %v423 = vsel %vm413, nan, %v422
        %v424 = vsub.f32 1.0, %v423
        %vm425 = vcmask 23552
        %v426 = vsel %vm425, %v424, 0.0
        %427 = vadd.xlane.f32.xlu0 %v426
        %v428 = vpop.xlane.xlu0 %427
        %v429 = vadd.f32 %v428, 1.0
        %430 = vrot.lane.b32.xlu0 %v315, 122
        %v431 = vpop.permute.xlu0 %430
        %vm433 = vcmask 48128
        %v434 = vsel %vm433, %v431, 0.0
        %435 = vadd.xlane.f32.xlu0 %v434
        %v436 = vpop.xlane.xlu0 %435
        %v437 = vadd.f32 %v436, 1.0
        %v438 = vld [vmem:[%s247] sm:$0xff]
        %v439 = vld [vmem:[%s247 + $0x8] sm:$0xff]
        %v440 = vld [vmem:[%s256] sm:$0xff]
        %v441 = vld [vmem:[%s256 + $0x8] sm:$0xff]
        %v442 = vsub.f32 %v438, %v440
        %v443 = vsub.f32 %v439, %v441
        %v444 = vmul.f32 %v442, %v442
        %v445 = vmul.f32 %v443, %v443
        %vm446 = vcmask 556032
        %v447 = vsel %vm446, %v445, 0.0
        %v448 = vadd.f32 %v444, %v447
        %449 = vadd.xlane.f32.xlu0 %v448
        %v450 = vpop.xlane.xlu0 %449
        %v451 = vmul.f32 %v437, %v429
        %v452 = vmul.f32 %v451, %v450
        %s453 = sadd.s32 %s27, %s28
        %s454 = smul.u32 %s453, 8
        %v455 = vlaneseq
        %v456 = vshrl.u32 %v455, 7
        %v457 = vstv %s454
        %v458 = vadd.s32 %v457, %v456
        %vm459 = vcmp.lt.s32.totalorder %v458, 8
        %v460 = vsel %vm459, %v452, 0.0
        %v461 = vsel %vm459, %v450, 0.0
        %s462 = sld [smem:[#allocation2]]
        %vm463 = vcmask 7168
        %v464 = vsel %vm463, %v460, 0.0
        %465 = vadd.xlane.f32.xlu0 %v464
        %v466 = vpop.xlane.xlu0 %465
        %v467 = vrot.slane %v466, 4
        %v468 = vadd.f32 %v466, %v467
        %v469 = vrot.slane %v468, 2
        %v470 = vadd.f32 %v468, %v469
        %v471 = vrot.slane %v470, 1
        %v472 = vadd.f32 %v470, %v471
        %s473 = vtos %v472
        %s474 = smul.f32 %s473, 0.125
        %s475 = sadd.f32 %s462, %s474
        %s476 = scalar_lea.smem [#allocation2], 0
        %477 = sst [smem:[%s476]] %s475
        %s478 = sld [smem:[#allocation2 + $0x1]]
        %v479 = vsel %vm463, %v461, 0.0
        %480 = vadd.xlane.f32.xlu0 %v479
        %v481 = vpop.xlane.xlu0 %480
        %v482 = vrot.slane %v481, 4
        %v483 = vadd.f32 %v481, %v482
        %v484 = vrot.slane %v483, 2
        %v485 = vadd.f32 %v483, %v484
        %v486 = vrot.slane %v485, 1
        %v487 = vadd.f32 %v485, %v486
        %s488 = vtos %v487
        %s489 = smul.f32 %s488, 0.125
        %s490 = sadd.f32 %s478, %s489
        %s491 = scalar_lea.smem [#allocation2], 1
        %492 = sst [smem:[%s491]] %s490
        // Predicated region
        $region49: #{tpu_custom_call.1} parent=31 // pred_check
          %p493 = pneg %p307
        $region50: #{tpu_custom_call.1} parent=31 // pred_check_branch
          %495 = sbr.rel (%p493) target = $region52
        $region51: #{tpu_custom_call.1} parent=31 // pred_region
          %v496 = vlaneseq
          %v497 = vand.u32 %v496, 127
          %vm498 = vcmp.eq.s32.totalorder %v497, 0
          %s499 = sld [smem:[#allocation2]]
          %s500 = sld [smem:[#allocation2 + $0x1]]
          %v501 = vstv %s499
          %v502 = vstv %s500
          %v503 = vsel %vm498, %v501, %v502
          %504 = vst [vmem:[%s297] sm:$0xff] %v503
        $region52: #{tpu_custom_call.1} parent=31 // pred_fallthru
          _
        %s505 = sand.u32 %s139, 1
        %s506 = scalar_lea.sflag [#allocation5], %s505
        %s507 = sand.u32 %s139, 1
        %s508 = smul.addr %s507, 8
        %s509 = scalar_lea.vmem [#allocation9], %s508
        // Predicated region
        $region53: #{tpu_custom_call.1} parent=31 // pred_check
          %p510 = pneg %p149
        $region54: #{tpu_custom_call.1} parent=31 // pred_check_branch
          %512 = sbr.rel (%p510) target = $region56
        $region55: #{tpu_custom_call.1} parent=31 // pred_region
          %s514 = ssub.s32 128, 128
          %515 = vsyncadd %s506, %s514
          %s516 = smul.addr %s27, 128
          %s517 = scalar_lea.hbm %s3, %s516
          %s519 = sshll.u32 %s509, 4
          %s520 = int_to_ptr.vmem [resolvable:$true] %s519
          %522 = dma.vmem_to_hbm [thread:$0]  %s520, 128, %s517, %s506
        $region56: #{tpu_custom_call.1} parent=31 // pred_fallthru
          _
      $region32: #{tpu_custom_call.1} parent=5 // pred_fallthru
        _
      %p523 = scmp.le.s32.totalorder 2, %s18
      // Predicated region
      $region57: #{tpu_custom_call.1} parent=5 // pred_check
        %p524 = pneg %p523
      $region58: #{tpu_custom_call.1} parent=5 // pred_check_branch
        %526 = sbr.rel (%p524) target = $region60
      $region59: #{tpu_custom_call.1} parent=5 // pred_region
        %s527 = ssub.s32 %s18, 2
        // Predicated region
        $region61: #{tpu_custom_call.1} parent=59 // pred_check
          %p528 = pneg %p155
        $region62: #{tpu_custom_call.1} parent=59 // pred_check_branch
          %530 = sbr.rel (%p528) target = $region64
        $region63: #{tpu_custom_call.1} parent=59 // pred_region
          %s531 = sand.u32 %s140, 1
          %s532 = scalar_lea.sflag [#allocation5], %s531
          %s533 = sand.u32 %s140, 1
          %s534 = smul.addr %s533, 8
          %s535 = scalar_lea.vmem [#allocation9], %s534
          %536 = dma.done %s532, 128
        $region64: #{tpu_custom_call.1} parent=59 // pred_fallthru
          _
      $region60: #{tpu_custom_call.1} parent=5 // pred_fallthru
        _
    $region6: #{tpu_custom_call.1} parent=1 // loop_footer
      %s22 = sadd.s32 1, %s18
    $region7: #{tpu_custom_call.1} parent=1 // loop_footer_branch
      %17 = sbr.rel target = $region3
    $region8: #{tpu_custom_call.1} parent=1 // loop_exit
      _
    %537 = vsyncpa [#allocation4], 1
    %s538 = scalar_lea.sflag [#allocation4], 1
    %539 = vsyncpa %s538, 1
    %540 = vsyncpa [#allocation7], 1
    %s541 = scalar_lea.sflag [#allocation7], 1
    %542 = vsyncpa %s541, 1
    %543 = vsyncpa [#allocation5], 1
    %s544 = scalar_lea.sflag [#allocation5], 1
    %545 = vsyncpa %s544, 1

</llo_original>
